<compile_context>
chip_gen: v5e
topology: v5e:2x2
jax: 0.10.0
libtpu: 0.0.40
codegen_flags: <defaults>
</compile_context>

<pallas_src>
import jax
import jax.numpy as jnp
from jax.experimental import pallas as pl
from jax.experimental.pallas import tpu as pltpu


def _round_up(v, m):
    return ((v + m - 1) // m) * m


# ----------------------------- Pallas kernel --------------------------------

def gin_fused_kernel(eps_ref, a_ref, x_ref, w_ref, b_ref, wh_ref, bh_ref, o_ref):
    """Fused GIN: L GINConv layers + linear head, everything VMEM-resident.

    eps_ref : SMEM [L]          f32  learned epsilons
    a_ref   : VMEM [Np, Np]     bf16 dense adjacency (A[i, j] = #edges j->i), zero-padded
    x_ref   : VMEM [Np, Dp]     bf16 node features, zero-padded
    w_ref   : VMEM [L, Dp, Dp]  bf16 conv Linear weights, pre-transposed to [in, out]
    b_ref   : VMEM [L, 1, Dp]   f32  conv Linear biases
    wh_ref  : VMEM [Dp, DOp]    bf16 head Linear weight, pre-transposed to [in, out]
    bh_ref  : VMEM [1, DOp]     f32  head Linear bias
    o_ref   : VMEM [Np, DOp]    f32  output node features (lane-dense store)
    """
    num_layers = eps_ref.shape[0]          # static
    a = a_ref[...]                         # bf16, loaded once, resident across layers
    h = x_ref[...].astype(jnp.float32)     # carried in vregs across layers (no VMEM round-trip)

    # Short static layer loop (L is tiny) — fully visible to the scheduler.
    for l in range(num_layers):
        # MXU: neighbor aggregation, bf16 operands / f32 accumulation.
        agg = jnp.dot(a, h.astype(jnp.bfloat16), preferred_element_type=jnp.float32)
        # VPU (f32): (1 + eps) skip — co-issues under the MXU slot for free.
        z = (1.0 + eps_ref[l]) * h + agg
        # MXU: feature transform; bias add stays f32.
        h = (jnp.dot(z.astype(jnp.bfloat16), w_ref[l],
                     preferred_element_type=jnp.float32)
             + b_ref[l])
        # TODO(synk): F.dropout is identity in eval mode; training-mode dropout
        # would need pltpu.prng_seed + pltpu.prng_random_bits here.

    # Post-MP node head (lane-dense padded output).
    out = (jnp.dot(h.astype(jnp.bfloat16), wh_ref[...],
                   preferred_element_type=jnp.float32)
           + bh_ref[...])
    o_ref[...] = out.astype(o_ref.dtype)


# ------------------------------ JAX wrapper ----------------------------------

def gin_forward(x, edge_index, params):
    """Full GIN forward pass (eval mode). Returns [N, dim_out]."""
    N, D = x.shape
    convs = params["convs"]
    L = len(convs)
    w_h, b_h = params["head"]
    dim_out = w_h.shape[0]

    # Pad to hardware-friendly shapes. N is padded to 128 so the aggregation
    # matmul's M and K dims run full-width on the MXU (and sublane-aligned).
    Np = _round_up(N, 128)
    Dp = _round_up(D, 128)
    DOp = _round_up(dim_out, 128)

    f32, bf16 = jnp.float32, jnp.bfloat16

    # Glue: densify edge_index -> adjacency so aggregation is an MXU matmul.
    # Small integer multiplicities are exact in bf16.
    src, dst = edge_index[0], edge_index[1]
    adj = jnp.zeros((Np, Np), f32).at[dst, src].add(1.0).astype(bf16)

    # Zero-padded node features (bf16 MXU operand).
    xp = jnp.pad(x.astype(f32), ((0, Np - N), (0, Dp - D))).astype(bf16)

    # Stack + pre-transpose conv params (PyTorch [out, in] -> kernel [in, out]),
    # one stack + one pad per tensor instead of L dynamic-update-slices.
    w_stack = jnp.pad(jnp.stack([w.T for (w, b, e) in convs]),
                      ((0, 0), (0, Dp - D), (0, Dp - D))).astype(bf16)
    b_stack = jnp.pad(jnp.stack([b for (w, b, e) in convs]),
                      ((0, 0), (0, 0), (0, Dp - D))).astype(f32)
    eps_stack = jnp.stack([e[0] for (w, b, e) in convs]).astype(f32)

    wh_p = jnp.pad(w_h.T.astype(f32), ((0, Dp - D), (0, DOp - dim_out))).astype(bf16)
    bh_p = jnp.pad(b_h.astype(f32), ((0, 0), (0, DOp - dim_out)))

    cost = pl.CostEstimate(
        flops=int(L * (2 * Np * Np * Dp + 2 * Np * Dp * Dp) + 2 * Np * Dp * DOp),
        transcendentals=0,
        bytes_accessed=int(2 * Np * Np + 2 * Np * Dp + 2 * L * Dp * Dp
                           + 4 * L * Dp + 2 * Dp * DOp + 4 * DOp + 4 * Np * DOp),
    )

    # Actual resident footprint; clamp so the same kernel keeps headroom on
    # v7x's 64 MiB-per-TC VMEM while still raising the scoped default.
    vmem_bytes = (2 * Np * Np + 2 * Np * Dp + 2 * L * Dp * Dp + 4 * L * Dp
                  + 2 * Dp * DOp + 4 * DOp + 4 * Np * DOp)
    vmem_limit = int(min(max(2 * vmem_bytes, 16 * 1024 * 1024), 48 * 1024 * 1024))

    out_p = pl.pallas_call(
        gin_fused_kernel,
        out_shape=jax.ShapeDtypeStruct((Np, DOp), f32),
        in_specs=[
            pl.BlockSpec(memory_space=pltpu.MemorySpace.SMEM),   # eps  [L]
            pl.BlockSpec(memory_space=pltpu.MemorySpace.VMEM),   # adjacency [Np, Np]
            pl.BlockSpec(memory_space=pltpu.MemorySpace.VMEM),   # x    [Np, Dp]
            pl.BlockSpec(memory_space=pltpu.MemorySpace.VMEM),   # W    [L, Dp, Dp]
            pl.BlockSpec(memory_space=pltpu.MemorySpace.VMEM),   # b    [L, 1, Dp]
            pl.BlockSpec(memory_space=pltpu.MemorySpace.VMEM),   # W_head [Dp, DOp]
            pl.BlockSpec(memory_space=pltpu.MemorySpace.VMEM),   # b_head [1, DOp]
        ],
        out_specs=pl.BlockSpec(memory_space=pltpu.MemorySpace.VMEM),
        cost_estimate=cost,
        compiler_params=pltpu.CompilerParams(vmem_limit_bytes=vmem_limit),
    )(eps_stack, adj, xp, w_stack, b_stack, wh_p, bh_p)

    # Slice the zero-padding back off (padded rows/cols never leak into real rows).
    return out_p[:N, :dim_out]


# ----------------------------- parameter init --------------------------------

def init_params(key, dim_in, dim_out, layers_mp):
    params = {"convs": [], "head": None}
    for _ in range(layers_mp):
        key, kw, kb = jax.random.split(key, 3)
        bound = 1.0 / jnp.sqrt(dim_in)
        w = jax.random.uniform(kw, (dim_in, dim_in), jnp.float32, -bound, bound)
        b = jax.random.uniform(kb, (1, dim_in), jnp.float32, -bound, bound)
        eps = jnp.zeros((1,), jnp.float32)   # GINConv train_eps=True, init 0.0
        params["convs"].append((w, b, eps))
    key, kw, kb = jax.random.split(key, 3)
    bound = 1.0 / jnp.sqrt(dim_in)
    w_h = jax.random.uniform(kw, (dim_out, dim_in), jnp.float32, -bound, bound)
    b_h = jax.random.uniform(kb, (1, dim_out), jnp.float32, -bound, bound)
    params["head"] = (w_h, b_h)
    return params


# --------------------------------- main ---------------------------------------

if __name__ == "__main__":
    N, E = 16, 48            # nodes, edges
    DIM_IN, DIM_OUT = 32, 8  # feature dims
    LAYERS_MP = 3            # cfg.gnn.layers_mp

    key = jax.random.PRNGKey(0)
    key, kx, ke = jax.random.split(key, 3)
    x = jax.random.normal(kx, (N, DIM_IN), jnp.float32)
    edge_index = jax.random.randint(ke, (2, E), 0, N, jnp.int32)

    params = init_params(key, DIM_IN, DIM_OUT, LAYERS_MP)

    out = jax.block_until_ready(gin_forward(x, edge_index, params))
    assert out.shape == (N, DIM_OUT)

    # Pure-JAX reference with the same bf16 dot-boundary casts / f32 accumulation.
    bf16, f32 = jnp.bfloat16, jnp.float32
    adj = jnp.zeros((N, N), f32).at[edge_index[1], edge_index[0]].add(1.0)
    a_bf = adj.astype(bf16)
    h = x.astype(bf16).astype(f32)
    for (w, b, eps) in params["convs"]:
        agg = jnp.dot(a_bf, h.astype(bf16), preferred_element_type=f32)
        z = (1.0 + eps[0]) * h + agg
        h = jnp.dot(z.astype(bf16), w.T.astype(bf16), preferred_element_type=f32) + b
    ref = jnp.dot(h.astype(bf16), params["head"][0].T.astype(bf16),
                  preferred_element_type=f32) + params["head"][1]

    assert jnp.allclose(out, ref, atol=2e-2, rtol=2e-2), (
        float(jnp.max(jnp.abs(out - ref))))

    print("KERNEL_OK")
</pallas_src>

<mosaic_0001>
module attributes {stable_mosaic.version = 11 : i64} {
  func.func @gin_fused_kernel(%arg0: memref<3xf32, #tpu.memory_space<smem>>, %arg1: memref<128x128xbf16, #tpu.memory_space<vmem>>, %arg2: memref<128x128xbf16, #tpu.memory_space<vmem>>, %arg3: memref<3x128x128xbf16, #tpu.memory_space<vmem>>, %arg4: memref<3x1x128xf32, #tpu.memory_space<vmem>>, %arg5: memref<128x128xbf16, #tpu.memory_space<vmem>>, %arg6: memref<1x128xf32, #tpu.memory_space<vmem>>, %arg7: memref<128x128xf32, #tpu.memory_space<vmem>>) attributes {dimension_semantics = [], scalar_prefetch = 0 : i64, scratch_operands = 0 : i64, tpu.core_type = #tpu.core_type<tc>} {
    %c0 = arith.constant 0 : index
    %c0_0 = arith.constant 0 : index
    %0 = vector.load %arg1[%c0, %c0_0] : memref<128x128xbf16, #tpu.memory_space<vmem>>, vector<128x128xbf16>
    %c0_1 = arith.constant 0 : index
    %c0_2 = arith.constant 0 : index
    %1 = vector.load %arg2[%c0_1, %c0_2] : memref<128x128xbf16, #tpu.memory_space<vmem>>, vector<128x128xbf16>
    %2 = arith.extf %1 : vector<128x128xbf16> to vector<128x128xf32>
    %3 = arith.truncf %2 : vector<128x128xf32> to vector<128x128xbf16>
    %cst = arith.constant dense<0.000000e+00> : vector<128x128xf32>
    %4 = tpu.matmul %0, %3, %cst {dimension_numbers = #tpu.dot_dimension_numbers<[1], [0], [0], [1], [0, 0, 1, 1], [], []>} : vector<128x128xbf16>, vector<128x128xbf16>, vector<128x128xf32> -> vector<128x128xf32>
    %c0_3 = arith.constant 0 : index
    %5 = memref.load %arg0[%c0_3] : memref<3xf32, #tpu.memory_space<smem>>
    %cst_4 = arith.constant 1.000000e+00 : f32
    %6 = arith.addf %cst_4, %5 : f32
    %7 = vector.broadcast %6 : f32 to vector<128x128xf32>
    %8 = arith.mulf %7, %2 : vector<128x128xf32>
    %9 = arith.addf %8, %4 : vector<128x128xf32>
    %10 = arith.truncf %9 : vector<128x128xf32> to vector<128x128xbf16>
    %c0_5 = arith.constant 0 : index
    %c0_6 = arith.constant 0 : index
    %c0_7 = arith.constant 0 : index
    %11 = vector.load %arg3[%c0_5, %c0_6, %c0_7] : memref<3x128x128xbf16, #tpu.memory_space<vmem>>, vector<1x128x128xbf16>
    %12 = vector.shape_cast %11 : vector<1x128x128xbf16> to vector<128x128xbf16>
    %cst_8 = arith.constant dense<0.000000e+00> : vector<128x128xf32>
    %13 = tpu.matmul %10, %12, %cst_8 {dimension_numbers = #tpu.dot_dimension_numbers<[1], [0], [0], [1], [0, 0, 1, 1], [], []>} : vector<128x128xbf16>, vector<128x128xbf16>, vector<128x128xf32> -> vector<128x128xf32>
    %c0_9 = arith.constant 0 : index
    %c0_10 = arith.constant 0 : index
    %c0_11 = arith.constant 0 : index
    %14 = vector.load %arg4[%c0_9, %c0_10, %c0_11] : memref<3x1x128xf32, #tpu.memory_space<vmem>>, vector<1x1x128xf32>
    %15 = vector.shape_cast %14 : vector<1x1x128xf32> to vector<1x128xf32>
    %16 = vector.broadcast %15 : vector<1x128xf32> to vector<128x128xf32>
    %17 = arith.addf %13, %16 : vector<128x128xf32>
    %18 = arith.truncf %17 : vector<128x128xf32> to vector<128x128xbf16>
    %cst_12 = arith.constant dense<0.000000e+00> : vector<128x128xf32>
    %19 = tpu.matmul %0, %18, %cst_12 {dimension_numbers = #tpu.dot_dimension_numbers<[1], [0], [0], [1], [0, 0, 1, 1], [], []>} : vector<128x128xbf16>, vector<128x128xbf16>, vector<128x128xf32> -> vector<128x128xf32>
    %c1 = arith.constant 1 : index
    %20 = memref.load %arg0[%c1] : memref<3xf32, #tpu.memory_space<smem>>
    %cst_13 = arith.constant 1.000000e+00 : f32
    %21 = arith.addf %cst_13, %20 : f32
    %22 = vector.broadcast %21 : f32 to vector<128x128xf32>
    %23 = arith.mulf %22, %17 : vector<128x128xf32>
    %24 = arith.addf %23, %19 : vector<128x128xf32>
    %25 = arith.truncf %24 : vector<128x128xf32> to vector<128x128xbf16>
    %c1_14 = arith.constant 1 : index
    %c0_15 = arith.constant 0 : index
    %c0_16 = arith.constant 0 : index
    %26 = vector.load %arg3[%c1_14, %c0_15, %c0_16] : memref<3x128x128xbf16, #tpu.memory_space<vmem>>, vector<1x128x128xbf16>
    %27 = vector.shape_cast %26 : vector<1x128x128xbf16> to vector<128x128xbf16>
    %cst_17 = arith.constant dense<0.000000e+00> : vector<128x128xf32>
    %28 = tpu.matmul %25, %27, %cst_17 {dimension_numbers = #tpu.dot_dimension_numbers<[1], [0], [0], [1], [0, 0, 1, 1], [], []>} : vector<128x128xbf16>, vector<128x128xbf16>, vector<128x128xf32> -> vector<128x128xf32>
    %c1_18 = arith.constant 1 : index
    %c0_19 = arith.constant 0 : index
    %c0_20 = arith.constant 0 : index
    %29 = vector.load %arg4[%c1_18, %c0_19, %c0_20] : memref<3x1x128xf32, #tpu.memory_space<vmem>>, vector<1x1x128xf32>
    %30 = vector.shape_cast %29 : vector<1x1x128xf32> to vector<1x128xf32>
    %31 = vector.broadcast %30 : vector<1x128xf32> to vector<128x128xf32>
    %32 = arith.addf %28, %31 : vector<128x128xf32>
    %33 = arith.truncf %32 : vector<128x128xf32> to vector<128x128xbf16>
    %cst_21 = arith.constant dense<0.000000e+00> : vector<128x128xf32>
    %34 = tpu.matmul %0, %33, %cst_21 {dimension_numbers = #tpu.dot_dimension_numbers<[1], [0], [0], [1], [0, 0, 1, 1], [], []>} : vector<128x128xbf16>, vector<128x128xbf16>, vector<128x128xf32> -> vector<128x128xf32>
    %c2 = arith.constant 2 : index
    %35 = memref.load %arg0[%c2] : memref<3xf32, #tpu.memory_space<smem>>
    %cst_22 = arith.constant 1.000000e+00 : f32
    %36 = arith.addf %cst_22, %35 : f32
    %37 = vector.broadcast %36 : f32 to vector<128x128xf32>
    %38 = arith.mulf %37, %32 : vector<128x128xf32>
    %39 = arith.addf %38, %34 : vector<128x128xf32>
    %40 = arith.truncf %39 : vector<128x128xf32> to vector<128x128xbf16>
    %c2_23 = arith.constant 2 : index
    %c0_24 = arith.constant 0 : index
    %c0_25 = arith.constant 0 : index
    %41 = vector.load %arg3[%c2_23, %c0_24, %c0_25] : memref<3x128x128xbf16, #tpu.memory_space<vmem>>, vector<1x128x128xbf16>
    %42 = vector.shape_cast %41 : vector<1x128x128xbf16> to vector<128x128xbf16>
    %cst_26 = arith.constant dense<0.000000e+00> : vector<128x128xf32>
    %43 = tpu.matmul %40, %42, %cst_26 {dimension_numbers = #tpu.dot_dimension_numbers<[1], [0], [0], [1], [0, 0, 1, 1], [], []>} : vector<128x128xbf16>, vector<128x128xbf16>, vector<128x128xf32> -> vector<128x128xf32>
    %c2_27 = arith.constant 2 : index
    %c0_28 = arith.constant 0 : index
    %c0_29 = arith.constant 0 : index
    %44 = vector.load %arg4[%c2_27, %c0_28, %c0_29] : memref<3x1x128xf32, #tpu.memory_space<vmem>>, vector<1x1x128xf32>
    %45 = vector.shape_cast %44 : vector<1x1x128xf32> to vector<1x128xf32>
    %46 = vector.broadcast %45 : vector<1x128xf32> to vector<128x128xf32>
    %47 = arith.addf %43, %46 : vector<128x128xf32>
    %48 = arith.truncf %47 : vector<128x128xf32> to vector<128x128xbf16>
    %c0_30 = arith.constant 0 : index
    %c0_31 = arith.constant 0 : index
    %49 = vector.load %arg5[%c0_30, %c0_31] : memref<128x128xbf16, #tpu.memory_space<vmem>>, vector<128x128xbf16>
    %cst_32 = arith.constant dense<0.000000e+00> : vector<128x128xf32>
    %50 = tpu.matmul %48, %49, %cst_32 {dimension_numbers = #tpu.dot_dimension_numbers<[1], [0], [0], [1], [0, 0, 1, 1], [], []>} : vector<128x128xbf16>, vector<128x128xbf16>, vector<128x128xf32> -> vector<128x128xf32>
    %c0_33 = arith.constant 0 : index
    %c0_34 = arith.constant 0 : index
    %51 = vector.load %arg6[%c0_33, %c0_34] : memref<1x128xf32, #tpu.memory_space<vmem>>, vector<1x128xf32>
    %52 = vector.broadcast %51 : vector<1x128xf32> to vector<128x128xf32>
    %53 = arith.addf %50, %52 : vector<128x128xf32>
    %c0_35 = arith.constant 0 : index
    %c0_36 = arith.constant 0 : index
    %54 = vector.load %arg7[%c0_35, %c0_36] : memref<128x128xf32, #tpu.memory_space<vmem>>, vector<128x128xf32>
    tpu.vector_store %arg7[%c0_35, %c0_36], %53 {strides = array<i32>} : memref<128x128xf32, #tpu.memory_space<vmem>>, vector<128x128xf32>,
    return
  }
}

</mosaic_0001>

<llo_original>
// kernel: tpu_custom_call.1
$region0: #{tpu_custom_call.1}
  #allocation0 [shape = 'u32[]', space=smem, size = 0x4, offset = 0x4, fixed_abs, tag = 'smem constant byte address 0x4 - core index']
  #allocation1 [shape = 'u32[72,128]{1,0:T(1,128)}', space=vmem, size = 0x9000, scoped, tag = 'internal scratch']
  %s0 = inlined_call_operand.hbm [shape: f32[3], index: 0, kind: input, shape index: {}]
  %s1 = inlined_call_operand.hbm [shape: bf16[128,128], index: 1, kind: input, shape index: {}]
  %s2 = inlined_call_operand.hbm [shape: bf16[128,128], index: 2, kind: input, shape index: {}]
  %s3 = inlined_call_operand.hbm [shape: bf16[3,128,128], index: 3, kind: input, shape index: {}]
  %s4 = inlined_call_operand.vmem [shape: f32[3,1,128], index: 4, kind: input, shape index: {}]
  %s5 = inlined_call_operand.hbm [shape: bf16[128,128], index: 5, kind: input, shape index: {}]
  %s6 = inlined_call_operand.vmem [shape: f32[1,128], index: 6, kind: input, shape index: {}]
  %s7 = inlined_call_operand.hbm [shape: f32[128,128], index: 7, kind: output, shape index: {}]
  %s8 = sld [smem:[#allocation0]]
  $region58: #{tpu_custom_call.1} parent=0
    _
  %s10 = ssub.s32 1, %s8
  %s11 = scalar_select 0, %s10, %s8
  $region1: #{tpu_custom_call.1} parent=0
    #allocation2 [shape = 'u8[512]{0}', space=smem, size = 0x200, scoped, tag = 'input window, operand 0, single buffered']
    #allocation3 [shape = 's32[1]{0}', space=sflag, size = 0x4, scoped, tag = 'scoped memory for tpu_custom_call.1']
    #allocation4 [shape = 's32[1]{0}', space=sflag, size = 0x4, scoped, tag = 'scoped memory for tpu_custom_call.1']
    #allocation5 [shape = 's32[1]{0}', space=sflag, size = 0x4, scoped, tag = 'scoped memory for tpu_custom_call.1']
    #allocation6 [shape = 'u8[32768]{0}', space=vmem, size = 0x8000, scoped, tag = 'input window, operand 1, single buffered']
    #allocation7 [shape = 'u8[32768]{0}', space=vmem, size = 0x8000, scoped, tag = 'input window, operand 2, single buffered']
    #allocation8 [shape = 's32[1]{0}', space=sflag, size = 0x4, scoped, tag = 'scoped memory for tpu_custom_call.1']
    #allocation9 [shape = 'u8[98304]{0}', space=vmem, size = 0x18000, scoped, tag = 'input window, operand 3, single buffered']
    #allocation10 [shape = 'u8[32768]{0}', space=vmem, size = 0x8000, scoped, tag = 'input window, operand 5, single buffered']
    #allocation11 [shape = 's32[1]{0}', space=sflag, size = 0x4, scoped, tag = 'scoped memory for tpu_custom_call.1']
    #allocation12 [shape = 'u8[65536]{0}', space=vmem, size = 0x10000, scoped, tag = 'output window, operand 0, single buffered']
    %12 = vsyncpa [#allocation5], 0
    %13 = vsyncpa [#allocation3], 0
    %14 = vsyncpa [#allocation8], 0
    %15 = vsyncpa [#allocation11], 0
    %16 = vsyncpa [#allocation4], 0
    // Predicated region
    $region2: #{tpu_custom_call.1} parent=1 // pred_check
      _
    $region3: #{tpu_custom_call.1} parent=1 // pred_check_branch
      %18 = sbr.rel (0) target = $region5
    $region4: #{tpu_custom_call.1} parent=1 // pred_region
      %20 = vsyncadd [#allocation5], 0
      %s22 = sshll.u32 %s0, 4
      %s23 = int_to_ptr.hbm [resolvable:$true] %s22
      %25 = dma.hbm_to_smem %s23, 16, [#allocation2], [#allocation5]
    $region5: #{tpu_custom_call.1} parent=1 // pred_fallthru
      _
    // Predicated region
    $region6: #{tpu_custom_call.1} parent=1 // pred_check
      _
    $region7: #{tpu_custom_call.1} parent=1 // pred_check_branch
      %27 = sbr.rel (0) target = $region9
    $region8: #{tpu_custom_call.1} parent=1 // pred_region
      %29 = vsyncadd [#allocation3], 0
      %s30 = sshll.u32 %s1, 4
      %s31 = int_to_ptr.hbm [resolvable:$true] %s30
      %s32 = sshll.u32 [#allocation6], 4
      %s33 = int_to_ptr.vmem [resolvable:$true] %s32
      %38 = dma.hbm_to_vmem [thread:$0]  %s31, 1024, %s33, [#allocation3], 64, 64, 4
    $region9: #{tpu_custom_call.1} parent=1 // pred_fallthru
      _
    // Predicated region
    $region10: #{tpu_custom_call.1} parent=1 // pred_check
      _
    $region11: #{tpu_custom_call.1} parent=1 // pred_check_branch
      %40 = sbr.rel (0) target = $region13
    $region12: #{tpu_custom_call.1} parent=1 // pred_region
      %42 = vsyncadd [#allocation8], 0
      %s43 = sshll.u32 %s2, 4
      %s44 = int_to_ptr.hbm [resolvable:$true] %s43
      %s45 = sshll.u32 [#allocation7], 4
      %s46 = int_to_ptr.vmem [resolvable:$true] %s45
      %51 = dma.hbm_to_vmem [thread:$0]  %s44, 1024, %s46, [#allocation8], 64, 64, 4
    $region13: #{tpu_custom_call.1} parent=1 // pred_fallthru
      _
    // Predicated region
    $region14: #{tpu_custom_call.1} parent=1 // pred_check
      _
    $region15: #{tpu_custom_call.1} parent=1 // pred_check_branch
      %53 = sbr.rel (0) target = $region17
    $region16: #{tpu_custom_call.1} parent=1 // pred_region
      %55 = vsyncadd [#allocation8], 0
      %s56 = sshll.u32 %s3, 4
      %s57 = int_to_ptr.hbm [resolvable:$true] %s56
      %s58 = sshll.u32 [#allocation9], 4
      %s59 = int_to_ptr.vmem [resolvable:$true] %s58
      %64 = dma.hbm_to_vmem [thread:$0]  %s57, 3072, %s59, [#allocation8], 64, 64, 4
    $region17: #{tpu_custom_call.1} parent=1 // pred_fallthru
      _
    // Predicated region
    $region18: #{tpu_custom_call.1} parent=1 // pred_check
      _
    $region19: #{tpu_custom_call.1} parent=1 // pred_check_branch
      %66 = sbr.rel (0) target = $region21
    $region20: #{tpu_custom_call.1} parent=1 // pred_region
      _
    $region21: #{tpu_custom_call.1} parent=1 // pred_fallthru
      _
    // Predicated region
    $region22: #{tpu_custom_call.1} parent=1 // pred_check
      _
    $region23: #{tpu_custom_call.1} parent=1 // pred_check_branch
      %68 = sbr.rel (0) target = $region25
    $region24: #{tpu_custom_call.1} parent=1 // pred_region
      %70 = vsyncadd [#allocation11], 0
      %s71 = sshll.u32 %s5, 4
      %s72 = int_to_ptr.hbm [resolvable:$true] %s71
      %s73 = sshll.u32 [#allocation10], 4
      %s74 = int_to_ptr.vmem [resolvable:$true] %s73
      %79 = dma.hbm_to_vmem [thread:$0]  %s72, 1024, %s74, [#allocation11], 64, 64, 4
    $region25: #{tpu_custom_call.1} parent=1 // pred_fallthru
      _
    // Predicated region
    $region26: #{tpu_custom_call.1} parent=1 // pred_check
      _
    $region27: #{tpu_custom_call.1} parent=1 // pred_check_branch
      %81 = sbr.rel (0) target = $region29
    $region28: #{tpu_custom_call.1} parent=1 // pred_region
      _
    $region29: #{tpu_custom_call.1} parent=1 // pred_fallthru
      _
    // Predicated region
    $region30: #{tpu_custom_call.1} parent=1 // pred_check
      _
    $region31: #{tpu_custom_call.1} parent=1 // pred_check_branch
      %83 = sbr.rel (0) target = $region33
    $region32: #{tpu_custom_call.1} parent=1 // pred_region
      %85 = dma.done [#allocation5], 16
    $region33: #{tpu_custom_call.1} parent=1 // pred_fallthru
      _
    // Predicated region
    $region34: #{tpu_custom_call.1} parent=1 // pred_check
      _
    $region35: #{tpu_custom_call.1} parent=1 // pred_check_branch
      %87 = sbr.rel (0) target = $region37
    $region36: #{tpu_custom_call.1} parent=1 // pred_region
      %89 = dma.done [#allocation3], 1024
    $region37: #{tpu_custom_call.1} parent=1 // pred_fallthru
      _
    // Predicated region
    $region38: #{tpu_custom_call.1} parent=1 // pred_check
      _
    $region39: #{tpu_custom_call.1} parent=1 // pred_check_branch
      %91 = sbr.rel (0) target = $region41
    $region40: #{tpu_custom_call.1} parent=1 // pred_region
      %93 = dma.done [#allocation8], 1024
    $region41: #{tpu_custom_call.1} parent=1 // pred_fallthru
      _
    // Predicated region
    $region42: #{tpu_custom_call.1} parent=1 // pred_check
      _
    $region43: #{tpu_custom_call.1} parent=1 // pred_check_branch
      %95 = sbr.rel (0) target = $region45
    $region44: #{tpu_custom_call.1} parent=1 // pred_region
      %97 = dma.done [#allocation8], 3072
    $region45: #{tpu_custom_call.1} parent=1 // pred_fallthru
      _
    // Predicated region
    $region46: #{tpu_custom_call.1} parent=1 // pred_check
      _
    $region47: #{tpu_custom_call.1} parent=1 // pred_check_branch
      %99 = sbr.rel (0) target = $region49
    $region48: #{tpu_custom_call.1} parent=1 // pred_region
      %101 = dma.done [#allocation11], 1024
    $region49: #{tpu_custom_call.1} parent=1 // pred_fallthru
      _
    %102 = sfence
    %v103 = vld [vmem:[#allocation6] sm:$0xf]
    %v104 = vld [vmem:[#allocation6 + $0x4] sm:$0xf]
    %v105 = vld [vmem:[#allocation6 + $0x8] sm:$0xf]
    %v106 = vld [vmem:[#allocation6 + $0xc] sm:$0xf]
    %v107 = vld [vmem:[#allocation6 + $0x10] sm:$0xf]
    %v108 = vld [vmem:[#allocation6 + $0x14] sm:$0xf]
    %v109 = vld [vmem:[#allocation6 + $0x18] sm:$0xf]
    %v110 = vld [vmem:[#allocation6 + $0x1c] sm:$0xf]
    %v111 = vld [vmem:[#allocation6 + $0x20] sm:$0xf]
    %v112 = vld [vmem:[#allocation6 + $0x24] sm:$0xf]
    %v113 = vld [vmem:[#allocation6 + $0x28] sm:$0xf]
    %v114 = vld [vmem:[#allocation6 + $0x2c] sm:$0xf]
    %v115 = vld [vmem:[#allocation6 + $0x30] sm:$0xf]
    %v116 = vld [vmem:[#allocation6 + $0x34] sm:$0xf]
    %v117 = vld [vmem:[#allocation6 + $0x38] sm:$0xf]
    %v118 = vld [vmem:[#allocation6 + $0x3c] sm:$0xf]
    %v119 = vld [vmem:[#allocation7] sm:$0xf]
    %v120 = vld [vmem:[#allocation7 + $0x4] sm:$0xf]
    %v121 = vld [vmem:[#allocation7 + $0x8] sm:$0xf]
    %v122 = vld [vmem:[#allocation7 + $0xc] sm:$0xf]
    %v123 = vld [vmem:[#allocation7 + $0x10] sm:$0xf]
    %v124 = vld [vmem:[#allocation7 + $0x14] sm:$0xf]
    %v125 = vld [vmem:[#allocation7 + $0x18] sm:$0xf]
    %v126 = vld [vmem:[#allocation7 + $0x1c] sm:$0xf]
    %v127 = vld [vmem:[#allocation7 + $0x20] sm:$0xf]
    %v128 = vld [vmem:[#allocation7 + $0x24] sm:$0xf]
    %v129 = vld [vmem:[#allocation7 + $0x28] sm:$0xf]
    %v130 = vld [vmem:[#allocation7 + $0x2c] sm:$0xf]
    %v131 = vld [vmem:[#allocation7 + $0x30] sm:$0xf]
    %v132 = vld [vmem:[#allocation7 + $0x34] sm:$0xf]
    %v133 = vld [vmem:[#allocation7 + $0x38] sm:$0xf]
    %v134 = vld [vmem:[#allocation7 + $0x3c] sm:$0xf]
    %v135 = vunpack.c.l.bf16 %v119
    %v136 = vunpack.c.l.bf16 %v120
    %v137 = vunpack.c.l.bf16 %v121
    %v138 = vunpack.c.l.bf16 %v122
    %v139 = vunpack.c.l.bf16 %v123
    %v140 = vunpack.c.l.bf16 %v124
    %v141 = vunpack.c.l.bf16 %v125
    %v142 = vunpack.c.l.bf16 %v126
    %v143 = vunpack.c.l.bf16 %v127
    %v144 = vunpack.c.l.bf16 %v128
    %v145 = vunpack.c.l.bf16 %v129
    %v146 = vunpack.c.l.bf16 %v130
    %v147 = vunpack.c.l.bf16 %v131
    %v148 = vunpack.c.l.bf16 %v132
    %v149 = vunpack.c.l.bf16 %v133
    %v150 = vunpack.c.l.bf16 %v134
    %v167 = vunpack.c.l.b16 %v103
    %v168 = vunpack.c.l.b16 %v104
    %v169 = vunpack.c.l.b16 %v105
    %v170 = vunpack.c.l.b16 %v106
    %v171 = vunpack.c.l.b16 %v107
    %v172 = vunpack.c.l.b16 %v108
    %v173 = vunpack.c.l.b16 %v109
    %v174 = vunpack.c.l.b16 %v110
    %v175 = vunpack.c.l.b16 %v111
    %v176 = vunpack.c.l.b16 %v112
    %v177 = vunpack.c.l.b16 %v113
    %v178 = vunpack.c.l.b16 %v114
    %v179 = vunpack.c.l.b16 %v115
    %v180 = vunpack.c.l.b16 %v116
    %v181 = vunpack.c.l.b16 %v117
    %v182 = vunpack.c.l.b16 %v118
    %v183 = vpack.c.b16 %v168, %v167
    %v184 = vpack.c.b16 %v170, %v169
    %v185 = vpack.c.b16 %v172, %v171
    %v186 = vpack.c.b16 %v174, %v173
    %v187 = vpack.c.b16 %v176, %v175
    %v188 = vpack.c.b16 %v178, %v177
    %v189 = vpack.c.b16 %v180, %v179
    %v190 = vpack.c.b16 %v182, %v181
    %v215 = vunpack.c.l.b16 %v119
    %v216 = vunpack.c.l.b16 %v120
    %v217 = vunpack.c.l.b16 %v121
    %v218 = vunpack.c.l.b16 %v122
    %v219 = vunpack.c.l.b16 %v123
    %v220 = vunpack.c.l.b16 %v124
    %v221 = vunpack.c.l.b16 %v125
    %v222 = vunpack.c.l.b16 %v126
    %v223 = vunpack.c.l.b16 %v127
    %v224 = vunpack.c.l.b16 %v128
    %v225 = vunpack.c.l.b16 %v129
    %v226 = vunpack.c.l.b16 %v130
    %v227 = vunpack.c.l.b16 %v131
    %v228 = vunpack.c.l.b16 %v132
    %v229 = vunpack.c.l.b16 %v133
    %v230 = vunpack.c.l.b16 %v134
    %v231 = vpack.c.b16 %v216, %v215
    %v232 = vpack.c.b16 %v218, %v217
    %v233 = vpack.c.b16 %v220, %v219
    %v234 = vpack.c.b16 %v222, %v221
    %v235 = vpack.c.b16 %v224, %v223
    %v236 = vpack.c.b16 %v226, %v225
    %v237 = vpack.c.b16 %v228, %v227
    %v238 = vpack.c.b16 %v230, %v229
    %247 = vmatpush.bf16.msra.mxu0 %v238
    %248 = vmatpush.bf16.msra.mxu0 %v237
    %249 = vmatpush.bf16.msra.mxu0 %v236
    %250 = vmatpush.bf16.msra.mxu0 %v235
    %251 = vmatpush.bf16.msra.mxu0 %v234
    %252 = vmatpush.bf16.msra.mxu0 %v233
    %253 = vmatpush.bf16.msra.mxu0 %v232
    %254 = vmatpush.bf16.msra.mxu0 %v231
    %255 = vmatmul.bf16.gmra.mxu0 %v183
    %v256 = vpop.f32.mrf.mxu0
    %v257 = vadd.f32 0.0, %v256
    %v258 = vpop.f32.mrf.mxu0
    %v259 = vadd.f32 0.0, %v258
    %260 = vmatmul.bf16.gmra.mxu0 %v184
    %v261 = vpop.f32.mrf.mxu0
    %v262 = vadd.f32 0.0, %v261
    %v263 = vpop.f32.mrf.mxu0
    %v264 = vadd.f32 0.0, %v263
    %265 = vmatmul.bf16.gmra.mxu0 %v185
    %v266 = vpop.f32.mrf.mxu0
    %v267 = vadd.f32 0.0, %v266
    %v268 = vpop.f32.mrf.mxu0
    %v269 = vadd.f32 0.0, %v268
    %270 = vmatmul.bf16.gmra.mxu0 %v186
    %v271 = vpop.f32.mrf.mxu0
    %v272 = vadd.f32 0.0, %v271
    %v273 = vpop.f32.mrf.mxu0
    %v274 = vadd.f32 0.0, %v273
    %275 = vmatmul.bf16.gmra.mxu0 %v187
    %v276 = vpop.f32.mrf.mxu0
    %v277 = vadd.f32 0.0, %v276
    %v278 = vpop.f32.mrf.mxu0
    %v279 = vadd.f32 0.0, %v278
    %280 = vmatmul.bf16.gmra.mxu0 %v188
    %v281 = vpop.f32.mrf.mxu0
    %v282 = vadd.f32 0.0, %v281
    %v283 = vpop.f32.mrf.mxu0
    %v284 = vadd.f32 0.0, %v283
    %285 = vmatmul.bf16.gmra.mxu0 %v189
    %v286 = vpop.f32.mrf.mxu0
    %v287 = vadd.f32 0.0, %v286
    %v288 = vpop.f32.mrf.mxu0
    %v289 = vadd.f32 0.0, %v288
    %290 = vmatmul.bf16.gmra.mxu0 %v190
    %v291 = vpop.f32.mrf.mxu0
    %v292 = vadd.f32 0.0, %v291
    %v293 = vpop.f32.mrf.mxu0
    %v294 = vadd.f32 0.0, %v293
    %295 = vdwg.mxu0
    %s296 = sld [smem:[#allocation2]]
    %s297 = sadd.f32 %s296, 1.0
    %v298 = vstv %s297
    %v299 = vmul.f32 %v298, %v135
    %v300 = vmul.f32 %v298, %v136
    %v301 = vmul.f32 %v298, %v137
    %v302 = vmul.f32 %v298, %v138
    %v303 = vmul.f32 %v298, %v139
    %v304 = vmul.f32 %v298, %v140
    %v305 = vmul.f32 %v298, %v141
    %v306 = vmul.f32 %v298, %v142
    %v307 = vmul.f32 %v298, %v143
    %v308 = vmul.f32 %v298, %v144
    %v309 = vmul.f32 %v298, %v145
    %v310 = vmul.f32 %v298, %v146
    %v311 = vmul.f32 %v298, %v147
    %v312 = vmul.f32 %v298, %v148
    %v313 = vmul.f32 %v298, %v149
    %v314 = vmul.f32 %v298, %v150
    %v315 = vadd.f32 %v299, %v257
    %v316 = vadd.f32 %v300, %v259
    %v317 = vadd.f32 %v301, %v262
    %v318 = vadd.f32 %v302, %v264
    %v319 = vadd.f32 %v303, %v267
    %v320 = vadd.f32 %v304, %v269
    %v321 = vadd.f32 %v305, %v272
    %v322 = vadd.f32 %v306, %v274
    %v323 = vadd.f32 %v307, %v277
    %v324 = vadd.f32 %v308, %v279
    %v325 = vadd.f32 %v309, %v282
    %v326 = vadd.f32 %v310, %v284
    %v327 = vadd.f32 %v311, %v287
    %v328 = vadd.f32 %v312, %v289
    %v329 = vadd.f32 %v313, %v292
    %v330 = vadd.f32 %v314, %v294
    %v331 = vpack.c.bf16 %v316, %v315
    %v332 = vpack.c.bf16 %v318, %v317
    %v333 = vpack.c.bf16 %v320, %v319
    %v334 = vpack.c.bf16 %v322, %v321
    %v335 = vpack.c.bf16 %v324, %v323
    %v336 = vpack.c.bf16 %v326, %v325
    %v337 = vpack.c.bf16 %v328, %v327
    %v338 = vpack.c.bf16 %v330, %v329
    %v339 = vld [vmem:[#allocation9] sm:$0xf]
    %v340 = vld [vmem:[#allocation9 + $0x4] sm:$0xf]
    %v341 = vld [vmem:[#allocation9 + $0x8] sm:$0xf]
    %v342 = vld [vmem:[#allocation9 + $0xc] sm:$0xf]
    %v343 = vld [vmem:[#allocation9 + $0x10] sm:$0xf]
    %v344 = vld [vmem:[#allocation9 + $0x14] sm:$0xf]
    %v345 = vld [vmem:[#allocation9 + $0x18] sm:$0xf]
    %v346 = vld [vmem:[#allocation9 + $0x1c] sm:$0xf]
    %v347 = vld [vmem:[#allocation9 + $0x20] sm:$0xf]
    %v348 = vld [vmem:[#allocation9 + $0x24] sm:$0xf]
    %v349 = vld [vmem:[#allocation9 + $0x28] sm:$0xf]
    %v350 = vld [vmem:[#allocation9 + $0x2c] sm:$0xf]
    %v351 = vld [vmem:[#allocation9 + $0x30] sm:$0xf]
    %v352 = vld [vmem:[#allocation9 + $0x34] sm:$0xf]
    %v353 = vld [vmem:[#allocation9 + $0x38] sm:$0xf]
    %v354 = vld [vmem:[#allocation9 + $0x3c] sm:$0xf]
    %v355 = vld [vmem:[%s4] sm:$0x1]
    %v357 = vperm.slane %v355, 0
    %v375 = vunpack.c.l.b16 %v339
    %v376 = vunpack.c.l.b16 %v340
    %v377 = vunpack.c.l.b16 %v341
    %v378 = vunpack.c.l.b16 %v342
    %v379 = vunpack.c.l.b16 %v343
    %v380 = vunpack.c.l.b16 %v344
    %v381 = vunpack.c.l.b16 %v345
    %v382 = vunpack.c.l.b16 %v346
    %v383 = vunpack.c.l.b16 %v347
    %v384 = vunpack.c.l.b16 %v348
    %v385 = vunpack.c.l.b16 %v349
    %v386 = vunpack.c.l.b16 %v350
    %v387 = vunpack.c.l.b16 %v351
    %v388 = vunpack.c.l.b16 %v352
    %v389 = vunpack.c.l.b16 %v353
    %v390 = vunpack.c.l.b16 %v354
    %v391 = vpack.c.b16 %v376, %v375
    %v392 = vpack.c.b16 %v378, %v377
    %v393 = vpack.c.b16 %v380, %v379
    %v394 = vpack.c.b16 %v382, %v381
    %v395 = vpack.c.b16 %v384, %v383
    %v396 = vpack.c.b16 %v386, %v385
    %v397 = vpack.c.b16 %v388, %v387
    %v398 = vpack.c.b16 %v390, %v389
    %407 = vmatpush.bf16.msra.mxu0 %v398
    %408 = vmatpush.bf16.msra.mxu0 %v397
    %409 = vmatpush.bf16.msra.mxu0 %v396
    %410 = vmatpush.bf16.msra.mxu0 %v395
    %411 = vmatpush.bf16.msra.mxu0 %v394
    %412 = vmatpush.bf16.msra.mxu0 %v393
    %413 = vmatpush.bf16.msra.mxu0 %v392
    %414 = vmatpush.bf16.msra.mxu0 %v391
    %415 = vmatmul.bf16.gmra.mxu0 %v331
    %v416 = vpop.f32.mrf.mxu0
    %v417 = vadd.f32 %v357, %v416
    %v418 = vpop.f32.mrf.mxu0
    %v419 = vadd.f32 %v357, %v418
    %420 = vmatmul.bf16.gmra.mxu0 %v332
    %v421 = vpop.f32.mrf.mxu0
    %v422 = vadd.f32 %v357, %v421
    %v423 = vpop.f32.mrf.mxu0
    %v424 = vadd.f32 %v357, %v423
    %425 = vmatmul.bf16.gmra.mxu0 %v333
    %v426 = vpop.f32.mrf.mxu0
    %v427 = vadd.f32 %v357, %v426
    %v428 = vpop.f32.mrf.mxu0
    %v429 = vadd.f32 %v357, %v428
    %430 = vmatmul.bf16.gmra.mxu0 %v334
    %v431 = vpop.f32.mrf.mxu0
    %v432 = vadd.f32 %v357, %v431
    %v433 = vpop.f32.mrf.mxu0
    %v434 = vadd.f32 %v357, %v433
    %435 = vmatmul.bf16.gmra.mxu0 %v335
    %v436 = vpop.f32.mrf.mxu0
    %v437 = vadd.f32 %v357, %v436
    %v438 = vpop.f32.mrf.mxu0
    %v439 = vadd.f32 %v357, %v438
    %440 = vmatmul.bf16.gmra.mxu0 %v336
    %v441 = vpop.f32.mrf.mxu0
    %v442 = vadd.f32 %v357, %v441
    %v443 = vpop.f32.mrf.mxu0
    %v444 = vadd.f32 %v357, %v443
    %445 = vmatmul.bf16.gmra.mxu0 %v337
    %v446 = vpop.f32.mrf.mxu0
    %v447 = vadd.f32 %v357, %v446
    %v448 = vpop.f32.mrf.mxu0
    %v449 = vadd.f32 %v357, %v448
    %450 = vmatmul.bf16.gmra.mxu0 %v338
    %v451 = vpop.f32.mrf.mxu0
    %v452 = vadd.f32 %v357, %v451
    %v453 = vpop.f32.mrf.mxu0
    %v454 = vadd.f32 %v357, %v453
    %455 = vdwg.mxu0
    %v456 = vpack.c.bf16 %v419, %v417
    %v457 = vpack.c.bf16 %v424, %v422
    %v458 = vpack.c.bf16 %v429, %v427
    %v459 = vpack.c.bf16 %v434, %v432
    %v460 = vpack.c.bf16 %v439, %v437
    %v461 = vpack.c.bf16 %v444, %v442
    %v462 = vpack.c.bf16 %v449, %v447
    %v463 = vpack.c.bf16 %v454, %v452
    %464 = vmatpush.bf16.msra.mxu0 %v463
    %465 = vmatpush.bf16.msra.mxu0 %v462
    %466 = vmatpush.bf16.msra.mxu0 %v461
    %467 = vmatpush.bf16.msra.mxu0 %v460
    %468 = vmatpush.bf16.msra.mxu0 %v459
    %469 = vmatpush.bf16.msra.mxu0 %v458
    %470 = vmatpush.bf16.msra.mxu0 %v457
    %471 = vmatpush.bf16.msra.mxu0 %v456
    %472 = vmatmul.bf16.gmra.mxu0 %v183
    %v473 = vpop.f32.mrf.mxu0
    %v474 = vadd.f32 0.0, %v473
    %v475 = vpop.f32.mrf.mxu0
    %v476 = vadd.f32 0.0, %v475
    %477 = vmatmul.bf16.gmra.mxu0 %v184
    %v478 = vpop.f32.mrf.mxu0
    %v479 = vadd.f32 0.0, %v478
    %v480 = vpop.f32.mrf.mxu0
    %v481 = vadd.f32 0.0, %v480
    %482 = vmatmul.bf16.gmra.mxu0 %v185
    %v483 = vpop.f32.mrf.mxu0
    %v484 = vadd.f32 0.0, %v483
    %v485 = vpop.f32.mrf.mxu0
    %v486 = vadd.f32 0.0, %v485
    %487 = vmatmul.bf16.gmra.mxu0 %v186
    %v488 = vpop.f32.mrf.mxu0
    %v489 = vadd.f32 0.0, %v488
    %v490 = vpop.f32.mrf.mxu0
    %v491 = vadd.f32 0.0, %v490
    %492 = vmatmul.bf16.gmra.mxu0 %v187
    %v493 = vpop.f32.mrf.mxu0
    %v494 = vadd.f32 0.0, %v493
    %v495 = vpop.f32.mrf.mxu0
    %v496 = vadd.f32 0.0, %v495
    %497 = vmatmul.bf16.gmra.mxu0 %v188
    %v498 = vpop.f32.mrf.mxu0
    %v499 = vadd.f32 0.0, %v498
    %v500 = vpop.f32.mrf.mxu0
    %v501 = vadd.f32 0.0, %v500
    %502 = vmatmul.bf16.gmra.mxu0 %v189
    %v503 = vpop.f32.mrf.mxu0
    %v504 = vadd.f32 0.0, %v503
    %v505 = vpop.f32.mrf.mxu0
    %v506 = vadd.f32 0.0, %v505
    %507 = vmatmul.bf16.gmra.mxu0 %v190
    %v508 = vpop.f32.mrf.mxu0
    %v509 = vadd.f32 0.0, %v508
    %v510 = vpop.f32.mrf.mxu0
    %v511 = vadd.f32 0.0, %v510
    %512 = vdwg.mxu0
    %s513 = sld [smem:[#allocation2 + $0x1]]
    %s514 = sadd.f32 %s513, 1.0
    %v515 = vstv %s514
    %v516 = vmul.f32 %v515, %v417
    %v517 = vmul.f32 %v515, %v419
    %v518 = vmul.f32 %v515, %v422
    %v519 = vmul.f32 %v515, %v424
    %v520 = vmul.f32 %v515, %v427
    %v521 = vmul.f32 %v515, %v429
    %v522 = vmul.f32 %v515, %v432
    %v523 = vmul.f32 %v515, %v434
    %v524 = vmul.f32 %v515, %v437
    %v525 = vmul.f32 %v515, %v439
    %v526 = vmul.f32 %v515, %v442
    %v527 = vmul.f32 %v515, %v444
    %v528 = vmul.f32 %v515, %v447
    %v529 = vmul.f32 %v515, %v449
    %v530 = vmul.f32 %v515, %v452
    %v531 = vmul.f32 %v515, %v454
    %v532 = vadd.f32 %v516, %v474
    %v533 = vadd.f32 %v517, %v476
    %v534 = vadd.f32 %v518, %v479
    %v535 = vadd.f32 %v519, %v481
    %v536 = vadd.f32 %v520, %v484
    %v537 = vadd.f32 %v521, %v486
    %v538 = vadd.f32 %v522, %v489
    %v539 = vadd.f32 %v523, %v491
    %v540 = vadd.f32 %v524, %v494
    %v541 = vadd.f32 %v525, %v496
    %v542 = vadd.f32 %v526, %v499
    %v543 = vadd.f32 %v527, %v501
    %v544 = vadd.f32 %v528, %v504
    %v545 = vadd.f32 %v529, %v506
    %v546 = vadd.f32 %v530, %v509
    %v547 = vadd.f32 %v531, %v511
    %v548 = vpack.c.bf16 %v533, %v532
    %v549 = vpack.c.bf16 %v535, %v534
    %v550 = vpack.c.bf16 %v537, %v536
    %v551 = vpack.c.bf16 %v539, %v538
    %v552 = vpack.c.bf16 %v541, %v540
    %v553 = vpack.c.bf16 %v543, %v542
    %v554 = vpack.c.bf16 %v545, %v544
    %v555 = vpack.c.bf16 %v547, %v546
    %s556 = scalar_lea.vmem [#allocation9], 64
    %v557 = vld [vmem:[%s556] sm:$0xf]
    %v558 = vld [vmem:[%s556 + $0x4] sm:$0xf]
    %v559 = vld [vmem:[%s556 + $0x8] sm:$0xf]
    %v560 = vld [vmem:[%s556 + $0xc] sm:$0xf]
    %v561 = vld [vmem:[%s556 + $0x10] sm:$0xf]
    %v562 = vld [vmem:[%s556 + $0x14] sm:$0xf]
    %v563 = vld [vmem:[%s556 + $0x18] sm:$0xf]
    %v564 = vld [vmem:[%s556 + $0x1c] sm:$0xf]
    %v565 = vld [vmem:[%s556 + $0x20] sm:$0xf]
    %v566 = vld [vmem:[%s556 + $0x24] sm:$0xf]
    %v567 = vld [vmem:[%s556 + $0x28] sm:$0xf]
    %v568 = vld [vmem:[%s556 + $0x2c] sm:$0xf]
    %v569 = vld [vmem:[%s556 + $0x30] sm:$0xf]
    %v570 = vld [vmem:[%s556 + $0x34] sm:$0xf]
    %v571 = vld [vmem:[%s556 + $0x38] sm:$0xf]
    %v572 = vld [vmem:[%s556 + $0x3c] sm:$0xf]
    %s573 = scalar_lea.vmem %s4, 1
    %v574 = vld [vmem:[%s573] sm:$0x1]
    %v576 = vperm.slane %v574, 0
    %v594 = vunpack.c.l.b16 %v557
    %v595 = vunpack.c.l.b16 %v558
    %v596 = vunpack.c.l.b16 %v559
    %v597 = vunpack.c.l.b16 %v560
    %v598 = vunpack.c.l.b16 %v561
    %v599 = vunpack.c.l.b16 %v562
    %v600 = vunpack.c.l.b16 %v563
    %v601 = vunpack.c.l.b16 %v564
    %v602 = vunpack.c.l.b16 %v565
    %v603 = vunpack.c.l.b16 %v566
    %v604 = vunpack.c.l.b16 %v567
    %v605 = vunpack.c.l.b16 %v568
    %v606 = vunpack.c.l.b16 %v569
    %v607 = vunpack.c.l.b16 %v570
    %v608 = vunpack.c.l.b16 %v571
    %v609 = vunpack.c.l.b16 %v572
    %v610 = vpack.c.b16 %v595, %v594
    %v611 = vpack.c.b16 %v597, %v596
    %v612 = vpack.c.b16 %v599, %v598
    %v613 = vpack.c.b16 %v601, %v600
    %v614 = vpack.c.b16 %v603, %v602
    %v615 = vpack.c.b16 %v605, %v604
    %v616 = vpack.c.b16 %v607, %v606
    %v617 = vpack.c.b16 %v609, %v608
    %626 = vmatpush.bf16.msra.mxu0 %v617
    %627 = vmatpush.bf16.msra.mxu0 %v616
    %628 = vmatpush.bf16.msra.mxu0 %v615
    %629 = vmatpush.bf16.msra.mxu0 %v614
    %630 = vmatpush.bf16.msra.mxu0 %v613
    %631 = vmatpush.bf16.msra.mxu0 %v612
    %632 = vmatpush.bf16.msra.mxu0 %v611
    %633 = vmatpush.bf16.msra.mxu0 %v610
    %634 = vmatmul.bf16.gmra.mxu0 %v548
    %v635 = vpop.f32.mrf.mxu0
    %v636 = vadd.f32 %v576, %v635
    %v637 = vpop.f32.mrf.mxu0
    %v638 = vadd.f32 %v576, %v637
    %639 = vmatmul.bf16.gmra.mxu0 %v549
    %v640 = vpop.f32.mrf.mxu0
    %v641 = vadd.f32 %v576, %v640
    %v642 = vpop.f32.mrf.mxu0
    %v643 = vadd.f32 %v576, %v642
    %644 = vmatmul.bf16.gmra.mxu0 %v550
    %v645 = vpop.f32.mrf.mxu0
    %v646 = vadd.f32 %v576, %v645
    %v647 = vpop.f32.mrf.mxu0
    %v648 = vadd.f32 %v576, %v647
    %649 = vmatmul.bf16.gmra.mxu0 %v551
    %v650 = vpop.f32.mrf.mxu0
    %v651 = vadd.f32 %v576, %v650
    %v652 = vpop.f32.mrf.mxu0
    %v653 = vadd.f32 %v576, %v652
    %654 = vmatmul.bf16.gmra.mxu0 %v552
    %v655 = vpop.f32.mrf.mxu0
    %v656 = vadd.f32 %v576, %v655
    %v657 = vpop.f32.mrf.mxu0
    %v658 = vadd.f32 %v576, %v657
    %659 = vmatmul.bf16.gmra.mxu0 %v553
    %v660 = vpop.f32.mrf.mxu0
    %v661 = vadd.f32 %v576, %v660
    %v662 = vpop.f32.mrf.mxu0
    %v663 = vadd.f32 %v576, %v662
    %664 = vmatmul.bf16.gmra.mxu0 %v554
    %v665 = vpop.f32.mrf.mxu0
    %v666 = vadd.f32 %v576, %v665
    %v667 = vpop.f32.mrf.mxu0
    %v668 = vadd.f32 %v576, %v667
    %669 = vmatmul.bf16.gmra.mxu0 %v555
    %v670 = vpop.f32.mrf.mxu0
    %v671 = vadd.f32 %v576, %v670
    %v672 = vpop.f32.mrf.mxu0
    %v673 = vadd.f32 %v576, %v672
    %674 = vdwg.mxu0
    %v675 = vpack.c.bf16 %v638, %v636
    %v676 = vpack.c.bf16 %v643, %v641
    %v677 = vpack.c.bf16 %v648, %v646
    %v678 = vpack.c.bf16 %v653, %v651
    %v679 = vpack.c.bf16 %v658, %v656
    %v680 = vpack.c.bf16 %v663, %v661
    %v681 = vpack.c.bf16 %v668, %v666
    %v682 = vpack.c.bf16 %v673, %v671
    %683 = vmatpush.bf16.msra.mxu0 %v682
    %684 = vmatpush.bf16.msra.mxu0 %v681
    %685 = vmatpush.bf16.msra.mxu0 %v680
    %686 = vmatpush.bf16.msra.mxu0 %v679
    %687 = vmatpush.bf16.msra.mxu0 %v678
    %688 = vmatpush.bf16.msra.mxu0 %v677
    %689 = vmatpush.bf16.msra.mxu0 %v676
    %690 = vmatpush.bf16.msra.mxu0 %v675
    %691 = vmatmul.bf16.gmra.mxu0 %v183
    %v692 = vpop.f32.mrf.mxu0
    %v693 = vadd.f32 0.0, %v692
    %v694 = vpop.f32.mrf.mxu0
    %v695 = vadd.f32 0.0, %v694
    %696 = vmatmul.bf16.gmra.mxu0 %v184
    %v697 = vpop.f32.mrf.mxu0
    %v698 = vadd.f32 0.0, %v697
    %v699 = vpop.f32.mrf.mxu0
    %v700 = vadd.f32 0.0, %v699
    %701 = vmatmul.bf16.gmra.mxu0 %v185
    %v702 = vpop.f32.mrf.mxu0
    %v703 = vadd.f32 0.0, %v702
    %v704 = vpop.f32.mrf.mxu0
    %v705 = vadd.f32 0.0, %v704
    %706 = vmatmul.bf16.gmra.mxu0 %v186
    %v707 = vpop.f32.mrf.mxu0
    %v708 = vadd.f32 0.0, %v707
    %v709 = vpop.f32.mrf.mxu0
    %v710 = vadd.f32 0.0, %v709
    %711 = vmatmul.bf16.gmra.mxu0 %v187
    %v712 = vpop.f32.mrf.mxu0
    %v713 = vadd.f32 0.0, %v712
    %v714 = vpop.f32.mrf.mxu0
    %v715 = vadd.f32 0.0, %v714
    %716 = vmatmul.bf16.gmra.mxu0 %v188
    %v717 = vpop.f32.mrf.mxu0
    %v718 = vadd.f32 0.0, %v717
    %v719 = vpop.f32.mrf.mxu0
    %v720 = vadd.f32 0.0, %v719
    %721 = vmatmul.bf16.gmra.mxu0 %v189
    %v722 = vpop.f32.mrf.mxu0
    %v723 = vadd.f32 0.0, %v722
    %v724 = vpop.f32.mrf.mxu0
    %v725 = vadd.f32 0.0, %v724
    %726 = vmatmul.bf16.gmra.mxu0 %v190
    %v727 = vpop.f32.mrf.mxu0
    %v728 = vadd.f32 0.0, %v727
    %v729 = vpop.f32.mrf.mxu0
    %v730 = vadd.f32 0.0, %v729
    %731 = vdwg.mxu0
    %s732 = sld [smem:[#allocation2 + $0x2]]
    %s733 = sadd.f32 %s732, 1.0
    %v734 = vstv %s733
    %v735 = vmul.f32 %v734, %v636
    %v736 = vmul.f32 %v734, %v638
    %v737 = vmul.f32 %v734, %v641
    %v738 = vmul.f32 %v734, %v643
    %v739 = vmul.f32 %v734, %v646
    %v740 = vmul.f32 %v734, %v648
    %v741 = vmul.f32 %v734, %v651
    %v742 = vmul.f32 %v734, %v653
    %v743 = vmul.f32 %v734, %v656
    %v744 = vmul.f32 %v734, %v658
    %v745 = vmul.f32 %v734, %v661
    %v746 = vmul.f32 %v734, %v663
    %v747 = vmul.f32 %v734, %v666
    %v748 = vmul.f32 %v734, %v668
    %v749 = vmul.f32 %v734, %v671
    %v750 = vmul.f32 %v734, %v673
    %v751 = vadd.f32 %v735, %v693
    %v752 = vadd.f32 %v736, %v695
    %v753 = vadd.f32 %v737, %v698
    %v754 = vadd.f32 %v738, %v700
    %v755 = vadd.f32 %v739, %v703
    %v756 = vadd.f32 %v740, %v705
    %v757 = vadd.f32 %v741, %v708
    %v758 = vadd.f32 %v742, %v710
    %v759 = vadd.f32 %v743, %v713
    %v760 = vadd.f32 %v744, %v715
    %v761 = vadd.f32 %v745, %v718
    %v762 = vadd.f32 %v746, %v720
    %v763 = vadd.f32 %v747, %v723
    %v764 = vadd.f32 %v748, %v725
    %v765 = vadd.f32 %v749, %v728
    %v766 = vadd.f32 %v750, %v730
    %v767 = vpack.c.bf16 %v752, %v751
    %v768 = vpack.c.bf16 %v754, %v753
    %v769 = vpack.c.bf16 %v756, %v755
    %v770 = vpack.c.bf16 %v758, %v757
    %v771 = vpack.c.bf16 %v760, %v759
    %v772 = vpack.c.bf16 %v762, %v761
    %v773 = vpack.c.bf16 %v764, %v763
    %v774 = vpack.c.bf16 %v766, %v765
    %s775 = scalar_lea.vmem [#allocation9], 128
    %v776 = vld [vmem:[%s775] sm:$0xf]
    %v777 = vld [vmem:[%s775 + $0x4] sm:$0xf]
    %v778 = vld [vmem:[%s775 + $0x8] sm:$0xf]
    %v779 = vld [vmem:[%s775 + $0xc] sm:$0xf]
    %v780 = vld [vmem:[%s775 + $0x10] sm:$0xf]
    %v781 = vld [vmem:[%s775 + $0x14] sm:$0xf]
    %v782 = vld [vmem:[%s775 + $0x18] sm:$0xf]
    %v783 = vld [vmem:[%s775 + $0x1c] sm:$0xf]
    %v784 = vld [vmem:[%s775 + $0x20] sm:$0xf]
    %v785 = vld [vmem:[%s775 + $0x24] sm:$0xf]
    %v786 = vld [vmem:[%s775 + $0x28] sm:$0xf]
    %v787 = vld [vmem:[%s775 + $0x2c] sm:$0xf]
    %v788 = vld [vmem:[%s775 + $0x30] sm:$0xf]
    %v789 = vld [vmem:[%s775 + $0x34] sm:$0xf]
    %v790 = vld [vmem:[%s775 + $0x38] sm:$0xf]
    %v791 = vld [vmem:[%s775 + $0x3c] sm:$0xf]
    %s792 = scalar_lea.vmem %s4, 2
    %v793 = vld [vmem:[%s792] sm:$0x1]
    %v795 = vperm.slane %v793, 0
    %v813 = vunpack.c.l.b16 %v776
    %v814 = vunpack.c.l.b16 %v777
    %v815 = vunpack.c.l.b16 %v778
    %v816 = vunpack.c.l.b16 %v779
    %v817 = vunpack.c.l.b16 %v780
    %v818 = vunpack.c.l.b16 %v781
    %v819 = vunpack.c.l.b16 %v782
    %v820 = vunpack.c.l.b16 %v783
    %v821 = vunpack.c.l.b16 %v784
    %v822 = vunpack.c.l.b16 %v785
    %v823 = vunpack.c.l.b16 %v786
    %v824 = vunpack.c.l.b16 %v787
    %v825 = vunpack.c.l.b16 %v788
    %v826 = vunpack.c.l.b16 %v789
    %v827 = vunpack.c.l.b16 %v790
    %v828 = vunpack.c.l.b16 %v791
    %v829 = vpack.c.b16 %v814, %v813
    %v830 = vpack.c.b16 %v816, %v815
    %v831 = vpack.c.b16 %v818, %v817
    %v832 = vpack.c.b16 %v820, %v819
    %v833 = vpack.c.b16 %v822, %v821
    %v834 = vpack.c.b16 %v824, %v823
    %v835 = vpack.c.b16 %v826, %v825
    %v836 = vpack.c.b16 %v828, %v827
    %845 = vmatpush.bf16.msra.mxu0 %v836
    %846 = vmatpush.bf16.msra.mxu0 %v835
    %847 = vmatpush.bf16.msra.mxu0 %v834
    %848 = vmatpush.bf16.msra.mxu0 %v833
    %849 = vmatpush.bf16.msra.mxu0 %v832
    %850 = vmatpush.bf16.msra.mxu0 %v831
    %851 = vmatpush.bf16.msra.mxu0 %v830
    %852 = vmatpush.bf16.msra.mxu0 %v829
    %853 = vmatmul.bf16.gmra.mxu0 %v767
    %v854 = vpop.f32.mrf.mxu0
    %v855 = vadd.f32 %v795, %v854
    %v856 = vpop.f32.mrf.mxu0
    %v857 = vadd.f32 %v795, %v856
    %858 = vmatmul.bf16.gmra.mxu0 %v768
    %v859 = vpop.f32.mrf.mxu0
    %v860 = vadd.f32 %v795, %v859
    %v861 = vpop.f32.mrf.mxu0
    %v862 = vadd.f32 %v795, %v861
    %863 = vmatmul.bf16.gmra.mxu0 %v769
    %v864 = vpop.f32.mrf.mxu0
    %v865 = vadd.f32 %v795, %v864
    %v866 = vpop.f32.mrf.mxu0
    %v867 = vadd.f32 %v795, %v866
    %868 = vmatmul.bf16.gmra.mxu0 %v770
    %v869 = vpop.f32.mrf.mxu0
    %v870 = vadd.f32 %v795, %v869
    %v871 = vpop.f32.mrf.mxu0
    %v872 = vadd.f32 %v795, %v871
    %873 = vmatmul.bf16.gmra.mxu0 %v771
    %v874 = vpop.f32.mrf.mxu0
    %v875 = vadd.f32 %v795, %v874
    %v876 = vpop.f32.mrf.mxu0
    %v877 = vadd.f32 %v795, %v876
    %878 = vmatmul.bf16.gmra.mxu0 %v772
    %v879 = vpop.f32.mrf.mxu0
    %v880 = vadd.f32 %v795, %v879
    %v881 = vpop.f32.mrf.mxu0
    %v882 = vadd.f32 %v795, %v881
    %883 = vmatmul.bf16.gmra.mxu0 %v773
    %v884 = vpop.f32.mrf.mxu0
    %v885 = vadd.f32 %v795, %v884
    %v886 = vpop.f32.mrf.mxu0
    %v887 = vadd.f32 %v795, %v886
    %888 = vmatmul.bf16.gmra.mxu0 %v774
    %v889 = vpop.f32.mrf.mxu0
    %v890 = vadd.f32 %v795, %v889
    %v891 = vpop.f32.mrf.mxu0
    %v892 = vadd.f32 %v795, %v891
    %893 = vdwg.mxu0
    %v894 = vpack.c.bf16 %v857, %v855
    %v895 = vpack.c.bf16 %v862, %v860
    %v896 = vpack.c.bf16 %v867, %v865
    %v897 = vpack.c.bf16 %v872, %v870
    %v898 = vpack.c.bf16 %v877, %v875
    %v899 = vpack.c.bf16 %v882, %v880
    %v900 = vpack.c.bf16 %v887, %v885
    %v901 = vpack.c.bf16 %v892, %v890
    %v902 = vld [vmem:[#allocation10] sm:$0xf]
    %v903 = vld [vmem:[#allocation10 + $0x4] sm:$0xf]
    %v904 = vld [vmem:[#allocation10 + $0x8] sm:$0xf]
    %v905 = vld [vmem:[#allocation10 + $0xc] sm:$0xf]
    %v906 = vld [vmem:[#allocation10 + $0x10] sm:$0xf]
    %v907 = vld [vmem:[#allocation10 + $0x14] sm:$0xf]
    %v908 = vld [vmem:[#allocation10 + $0x18] sm:$0xf]
    %v909 = vld [vmem:[#allocation10 + $0x1c] sm:$0xf]
    %v910 = vld [vmem:[#allocation10 + $0x20] sm:$0xf]
    %v911 = vld [vmem:[#allocation10 + $0x24] sm:$0xf]
    %v912 = vld [vmem:[#allocation10 + $0x28] sm:$0xf]
    %v913 = vld [vmem:[#allocation10 + $0x2c] sm:$0xf]
    %v914 = vld [vmem:[#allocation10 + $0x30] sm:$0xf]
    %v915 = vld [vmem:[#allocation10 + $0x34] sm:$0xf]
    %v916 = vld [vmem:[#allocation10 + $0x38] sm:$0xf]
    %v917 = vld [vmem:[#allocation10 + $0x3c] sm:$0xf]
    %v918 = vld [vmem:[%s6] sm:$0x1]
    %v920 = vperm.slane %v918, 0
    %v938 = vunpack.c.l.b16 %v902
    %v939 = vunpack.c.l.b16 %v903
    %v940 = vunpack.c.l.b16 %v904
    %v941 = vunpack.c.l.b16 %v905
    %v942 = vunpack.c.l.b16 %v906
    %v943 = vunpack.c.l.b16 %v907
    %v944 = vunpack.c.l.b16 %v908
    %v945 = vunpack.c.l.b16 %v909
    %v946 = vunpack.c.l.b16 %v910
    %v947 = vunpack.c.l.b16 %v911
    %v948 = vunpack.c.l.b16 %v912
    %v949 = vunpack.c.l.b16 %v913
    %v950 = vunpack.c.l.b16 %v914
    %v951 = vunpack.c.l.b16 %v915
    %v952 = vunpack.c.l.b16 %v916
    %v953 = vunpack.c.l.b16 %v917
    %v954 = vpack.c.b16 %v939, %v938
    %v955 = vpack.c.b16 %v941, %v940
    %v956 = vpack.c.b16 %v943, %v942
    %v957 = vpack.c.b16 %v945, %v944
    %v958 = vpack.c.b16 %v947, %v946
    %v959 = vpack.c.b16 %v949, %v948
    %v960 = vpack.c.b16 %v951, %v950
    %v961 = vpack.c.b16 %v953, %v952
    %970 = vmatpush.bf16.msra.mxu0 %v961
    %971 = vmatpush.bf16.msra.mxu0 %v960
    %972 = vmatpush.bf16.msra.mxu0 %v959
    %973 = vmatpush.bf16.msra.mxu0 %v958
    %974 = vmatpush.bf16.msra.mxu0 %v957
    %975 = vmatpush.bf16.msra.mxu0 %v956
    %976 = vmatpush.bf16.msra.mxu0 %v955
    %977 = vmatpush.bf16.msra.mxu0 %v954
    %978 = vmatmul.bf16.gmra.mxu0 %v894
    %v979 = vpop.f32.mrf.mxu0
    %v980 = vadd.f32 %v920, %v979
    %v981 = vpop.f32.mrf.mxu0
    %v982 = vadd.f32 %v920, %v981
    %983 = vmatmul.bf16.gmra.mxu0 %v895
    %v984 = vpop.f32.mrf.mxu0
    %v985 = vadd.f32 %v920, %v984
    %v986 = vpop.f32.mrf.mxu0
    %v987 = vadd.f32 %v920, %v986
    %988 = vmatmul.bf16.gmra.mxu0 %v896
    %v989 = vpop.f32.mrf.mxu0
    %v990 = vadd.f32 %v920, %v989
    %v991 = vpop.f32.mrf.mxu0
    %v992 = vadd.f32 %v920, %v991
    %993 = vmatmul.bf16.gmra.mxu0 %v897
    %v994 = vpop.f32.mrf.mxu0
    %v995 = vadd.f32 %v920, %v994
    %v996 = vpop.f32.mrf.mxu0
    %v997 = vadd.f32 %v920, %v996
    %998 = vmatmul.bf16.gmra.mxu0 %v898
    %v999 = vpop.f32.mrf.mxu0
    %v1000 = vadd.f32 %v920, %v999
    %v1001 = vpop.f32.mrf.mxu0
    %v1002 = vadd.f32 %v920, %v1001
    %1003 = vmatmul.bf16.gmra.mxu0 %v899
    %v1004 = vpop.f32.mrf.mxu0
    %v1005 = vadd.f32 %v920, %v1004
    %v1006 = vpop.f32.mrf.mxu0
    %v1007 = vadd.f32 %v920, %v1006
    %1008 = vmatmul.bf16.gmra.mxu0 %v900
    %v1009 = vpop.f32.mrf.mxu0
    %v1010 = vadd.f32 %v920, %v1009
    %v1011 = vpop.f32.mrf.mxu0
    %v1012 = vadd.f32 %v920, %v1011
    %1013 = vmatmul.bf16.gmra.mxu0 %v901
    %v1014 = vpop.f32.mrf.mxu0
    %v1015 = vadd.f32 %v920, %v1014
    %v1016 = vpop.f32.mrf.mxu0
    %v1017 = vadd.f32 %v920, %v1016
    %1018 = vdwg.mxu0
    %1019 = vst [vmem:[#allocation12] sm:$0xff] %v980
    %1020 = vst [vmem:[#allocation12 + $0x8] sm:$0xff] %v982
    %1021 = vst [vmem:[#allocation12 + $0x10] sm:$0xff] %v985
    %1022 = vst [vmem:[#allocation12 + $0x18] sm:$0xff] %v987
    %1023 = vst [vmem:[#allocation12 + $0x20] sm:$0xff] %v990
    %1024 = vst [vmem:[#allocation12 + $0x28] sm:$0xff] %v992
    %1025 = vst [vmem:[#allocation12 + $0x30] sm:$0xff] %v995
    %1026 = vst [vmem:[#allocation12 + $0x38] sm:$0xff] %v997
    %1027 = vst [vmem:[#allocation12 + $0x40] sm:$0xff] %v1000
    %1028 = vst [vmem:[#allocation12 + $0x48] sm:$0xff] %v1002
    %1029 = vst [vmem:[#allocation12 + $0x50] sm:$0xff] %v1005
    %1030 = vst [vmem:[#allocation12 + $0x58] sm:$0xff] %v1007
    %1031 = vst [vmem:[#allocation12 + $0x60] sm:$0xff] %v1010
    %1032 = vst [vmem:[#allocation12 + $0x68] sm:$0xff] %v1012
    %1033 = vst [vmem:[#allocation12 + $0x70] sm:$0xff] %v1015
    %1034 = vst [vmem:[#allocation12 + $0x78] sm:$0xff] %v1017
    // Predicated region
    $region50: #{tpu_custom_call.1} parent=1 // pred_check
      _
    $region51: #{tpu_custom_call.1} parent=1 // pred_check_branch
      %1036 = sbr.rel (0) target = $region53
    $region52: #{tpu_custom_call.1} parent=1 // pred_region
      %1038 = vsyncadd [#allocation4], 0
      %s1039 = sshll.u32 [#allocation12], 4
      %s1040 = int_to_ptr.vmem [resolvable:$true] %s1039
      %s1041 = sshll.u32 %s7, 4
      %s1042 = int_to_ptr.hbm [resolvable:$true] %s1041
      %1047 = dma.vmem_to_hbm [thread:$0]  %s1040, 2048, %s1042, [#allocation4], 128, 128, 8
    $region53: #{tpu_custom_call.1} parent=1 // pred_fallthru
      _
    // Predicated region
    $region54: #{tpu_custom_call.1} parent=1 // pred_check
      _
    $region55: #{tpu_custom_call.1} parent=1 // pred_check_branch
      %1049 = sbr.rel (0) target = $region57
    $region56: #{tpu_custom_call.1} parent=1 // pred_region
      %1051 = dma.done [#allocation4], 2048
    $region57: #{tpu_custom_call.1} parent=1 // pred_fallthru
      _
    %1052 = vsyncpa [#allocation3], 1
    %1053 = vsyncpa [#allocation8], 1
    %1054 = vsyncpa [#allocation11], 1
    %1055 = vsyncpa [#allocation4], 1
    %1056 = vsyncpa [#allocation5], 1

</llo_original>
